<compile_context>
chip_gen: v6e
topology: v6e:2x2x1
jax: 0.10.0
libtpu: 0.0.40
codegen_flags: <defaults>
</compile_context>

<pallas_src>
import functools

import jax
import jax.numpy as jnp
from jax import lax
from jax.experimental import pallas as pl
from jax.experimental.pallas import tpu as pltpu

LANES = 128                  # TPU lane width (last dim of every block)
MAX_ROW_TILE = 2048          # rows per grid step: 2048x128 f32 = 1 MiB/block
MIN_ROWS_PER_PARTIAL = 512   # don't split tiny problems across TensorCores
DEFAULT_PARTIALS = 2         # fallback if the TC count can't be queried


def _num_tensorcores():
    """Best-effort TensorCore count (2 on v7x). Fallback 2 is harmless on
    1-TC chips for the sizes where the split is actually used."""
    try:
        info = pltpu.get_tpu_info()
        for name in ("num_tensorcores", "num_cores", "core_count",
                     "tensorcore_count"):
            v = getattr(info, name, None)
            if isinstance(v, int) and 1 <= v <= 16:
                return v
    except Exception:
        pass
    return DEFAULT_PARTIALS


def _static_pow(x, p):
    """x ** p with p a compile-time Python float.

    Exponentiation-by-squaring (pure VPU multiplies) for non-negative integer
    p; falls back to jnp.power (EUP) for non-integral exponents."""
    ip = int(p)
    if float(ip) == float(p) and ip >= 0:
        if ip == 0:
            return jnp.ones_like(x)
        result = None
        base = x
        e = ip
        while e:
            if e & 1:
                result = base if result is None else result * base
            e >>= 1
            if e:
                base = base * base
        return result
    return jnp.power(x, p)


def _focal_loss_kernel(labels_ref, output_ref, acc_ref, *,
                       alfa, beta, inv_n, blocks_per_core, row_tile,
                       total_blocks, valid_rows, num_partials):
    c = pl.program_id(0)                 # "parallel" core axis
    i = pl.program_id(1)                 # "arbitrary" reduction axis
    b = c * blocks_per_core + i          # logical block id

    @pl.when(i == 0)
    def _():
        acc_ref[...] = jnp.zeros_like(acc_ref)

    # cast once per block (inputs stay in their native dtype in HBM)
    lab = labels_ref[...].astype(jnp.float32)
    out = output_ref[...].astype(jnp.float32)

    def accumulate(valid):
        one_minus_out = 1.0 - out
        is_point = lab == 1.0
        # point coefficient: (1-out)^alfa ; background: (1-lab)^beta * out^alfa / n
        point_coef = _static_pow(one_minus_out, alfa)
        bg_coef = _static_pow(1.0 - lab, beta) * _static_pow(out, alfa) * inv_n
        # branches are mutually exclusive (bg_coef == 0 exactly where lab == 1),
        # so a single log suffices
        coef = jnp.where(is_point, point_coef, bg_coef)
        arg = jnp.where(is_point, out, one_minus_out)
        if valid is not None:            # mask garbage rows of a ragged tail block
            coef = jnp.where(valid, coef, 0.0)
            arg = jnp.where(valid, arg, 1.0)
        contrib = coef * jnp.log(arg)    # single EUP log per element
        # fold (row_tile,128) -> (8,128) with pure vreg adds; acc stays tiny
        acc_ref[...] += contrib.reshape(row_tile // 8, 8, LANES).sum(axis=0)

    has_overhang = num_partials * blocks_per_core > total_blocks
    has_oob_rows = total_blocks * row_tile > valid_rows

    if has_oob_rows:
        @pl.when(b < total_blocks - 1)
        def _():
            accumulate(None)

        @pl.when(b == total_blocks - 1)
        def _():
            row_idx = lax.broadcasted_iota(jnp.int32, (row_tile, LANES), 0)
            accumulate(row_idx + b * row_tile < valid_rows)
        # b >= total_blocks (overhang steps): skip entirely
    elif has_overhang:
        @pl.when(b < total_blocks)
        def _():
            accumulate(None)
    else:
        accumulate(None)


def total_loss(labels, output, *, alfa=2.0, beta=4.0, binary_labels=False):
    """Pallas TotalLoss.  labels/output: same shape (e.g. NCHW), any float dtype."""
    assert labels.shape == output.shape
    n_total = labels.size
    assert n_total > 0

    # ---- lane-dense 2D view (free reshape when n % 128 == 0) ----
    rows = -(-n_total // LANES)                       # ceil
    flat_lab = labels.reshape(-1)
    flat_out = output.reshape(-1)
    pad = rows * LANES - n_total
    if pad:
        # TODO(synk): rare path (n % 128 != 0) costs one extra HBM pass; the zero
        # pads contribute exactly 0 (coef = 0, log(1) = 0) so no masking needed.
        flat_lab = jnp.pad(flat_lab, (0, pad))
        flat_out = jnp.pad(flat_out, (0, pad))
    labels2d = flat_lab.reshape(rows, LANES)
    output2d = flat_out.reshape(rows, LANES)

    # ---- tiling (all static Python ints) ----
    num_partials = max(1, min(_num_tensorcores(), rows // MIN_ROWS_PER_PARTIAL))
    rows_per_core = -(-rows // num_partials)
    # multiple of 32 -> dense sublane packing for f32 / bf16 / int8 inputs
    row_tile = min(MAX_ROW_TILE, ((rows_per_core + 31) // 32) * 32)
    total_blocks = -(-rows // row_tile)
    num_partials = max(1, min(num_partials, total_blocks))
    blocks_per_core = -(-total_blocks // num_partials)

    beta_eff = 1.0 if binary_labels else float(beta)

    kernel = functools.partial(
        _focal_loss_kernel,
        alfa=float(alfa), beta=beta_eff, inv_n=1.0 / float(n_total),
        blocks_per_core=blocks_per_core, row_tile=row_tile,
        total_blocks=total_blocks, valid_rows=rows, num_partials=num_partials)

    if num_partials * blocks_per_core > total_blocks:
        # clamp so DMAs of "overhang" grid steps stay in bounds
        # (their contribution is skipped inside the kernel)
        in_map = lambda c, i: (jnp.minimum(c * blocks_per_core + i,
                                           total_blocks - 1), 0)
    else:
        in_map = lambda c, i: (c * blocks_per_core + i, 0)
    out_map = lambda c, i: (c, 0)        # (8,128) resident accumulator per core

    cost = pl.CostEstimate(
        flops=14 * n_total,
        transcendentals=n_total,
        bytes_accessed=n_total * (labels.dtype.itemsize + output.dtype.itemsize)
        + num_partials * 8 * LANES * 4)

    partials = pl.pallas_call(
        kernel,
        out_shape=jax.ShapeDtypeStruct((num_partials * 8, LANES), jnp.float32),
        grid_spec=pltpu.PrefetchScalarGridSpec(
            num_scalar_prefetch=0,
            grid=(num_partials, blocks_per_core),
            in_specs=[
                pl.BlockSpec((row_tile, LANES), in_map),
                pl.BlockSpec((row_tile, LANES), in_map),
            ],
            out_specs=pl.BlockSpec((8, LANES), out_map),
        ),
        compiler_params=pltpu.CompilerParams(
            dimension_semantics=("parallel", "arbitrary")),
        cost_estimate=cost,
    )(labels2d, output2d)

    # tiny final cross-lane / cross-core reduce + negation
    return -jnp.sum(partials)


def _reference(labels, output, alfa=2.0, beta=4.0):
    mask = (labels == 1.0)
    point = jnp.sum(jnp.where(mask,
                              (1.0 - output) ** alfa * jnp.log(output),
                              0.0))
    bg = jnp.mean((1.0 - labels) ** beta * output ** alfa
                  * jnp.log(1.0 - output))
    return -(point + bg)


if __name__ == "__main__":
    key = jax.random.PRNGKey(0)
    k1, k2 = jax.random.split(key)

    B, C, H, W = 2, 4, 16, 16  # NCHW, 2048 elements total
    # output strictly inside (0, 1) so log(output) / log(1-output) are finite
    output = jax.random.uniform(k1, (B, C, H, W),
                                minval=0.05, maxval=0.95, dtype=jnp.float32)
    # binary labels (a handful of "points" == 1.0, rest 0.0)
    labels = (jax.random.uniform(k2, (B, C, H, W)) < 0.1).astype(jnp.float32)

    loss = jax.block_until_ready(total_loss(labels, output, alfa=2.0, beta=4.0))
    ref = _reference(labels, output, alfa=2.0, beta=4.0)

    assert jnp.isfinite(loss)
    assert jnp.allclose(loss, ref, rtol=1e-5, atol=1e-5), (loss, ref)
    print("KERNEL_OK")
</pallas_src>

<mosaic_0001>
module attributes {stable_mosaic.version = 11 : i64} {
  func.func @_focal_loss_kernel(%arg0: i32, %arg1: i32, %arg2: memref<32x128xf32, #tpu.memory_space<vmem>>, %arg3: memref<32x128xf32, #tpu.memory_space<vmem>>, %arg4: memref<8x128xf32, #tpu.memory_space<vmem>>) attributes {dimension_semantics = [#tpu.dimension_semantics<parallel>, #tpu.dimension_semantics<arbitrary>], iteration_bounds = array<i64: 1, 1>, scalar_prefetch = 0 : i64, scratch_operands = 0 : i64, tpu.core_type = #tpu.core_type<tc>, window_params = [{transform_indices = @transform_0, window_bounds = array<i64: 32, 128>}, {transform_indices = @transform_1, window_bounds = array<i64: 32, 128>}, {transform_indices = @transform_2, window_bounds = array<i64: 8, 128>}]} {
    %c1_i32 = arith.constant 1 : i32
    %0 = arith.muli %arg0, %c1_i32 : i32
    %1 = arith.addi %0, %arg1 : i32
    %c0_i32 = arith.constant 0 : i32
    %2 = arith.cmpi eq, %arg1, %c0_i32 : i32
    %3 = arith.extui %2 : i1 to i32
    %c0_i32_0 = arith.constant 0 : i32
    %4 = arith.cmpi ne, %3, %c0_i32_0 : i32
    scf.if %4 {
      %cst = arith.constant 0.000000e+00 : f32
      %13 = vector.broadcast %cst : f32 to vector<8x128xf32>
      %c0_8 = arith.constant 0 : index
      %c0_9 = arith.constant 0 : index
      %14 = vector.load %arg4[%c0_8, %c0_9] : memref<8x128xf32, #tpu.memory_space<vmem>>, vector<8x128xf32>
      tpu.vector_store %arg4[%c0_8, %c0_9], %13 {strides = array<i32>} : memref<8x128xf32, #tpu.memory_space<vmem>>, vector<8x128xf32>,
    } else {
    }
    %c0 = arith.constant 0 : index
    %c0_1 = arith.constant 0 : index
    %5 = vector.load %arg2[%c0, %c0_1] : memref<32x128xf32, #tpu.memory_space<vmem>>, vector<32x128xf32>
    %c0_2 = arith.constant 0 : index
    %c0_3 = arith.constant 0 : index
    %6 = vector.load %arg3[%c0_2, %c0_3] : memref<32x128xf32, #tpu.memory_space<vmem>>, vector<32x128xf32>
    %c0_i32_4 = arith.constant 0 : i32
    %7 = arith.cmpi slt, %1, %c0_i32_4 : i32
    %8 = arith.extui %7 : i1 to i32
    %c0_i32_5 = arith.constant 0 : i32
    %9 = arith.cmpi ne, %8, %c0_i32_5 : i32
    scf.if %9 {
      %cst = arith.constant 1.000000e+00 : f32
      %13 = vector.broadcast %cst : f32 to vector<32x128xf32>
      %14 = arith.subf %13, %6 : vector<32x128xf32>
      %cst_8 = arith.constant 1.000000e+00 : f32
      %15 = vector.broadcast %cst_8 : f32 to vector<32x128xf32>
      %16 = arith.cmpf oeq, %5, %15 : vector<32x128xf32>
      %17 = arith.mulf %14, %14 : vector<32x128xf32>
      %cst_9 = arith.constant 1.000000e+00 : f32
      %18 = vector.broadcast %cst_9 : f32 to vector<32x128xf32>
      %19 = arith.subf %18, %5 : vector<32x128xf32>
      %20 = arith.mulf %19, %19 : vector<32x128xf32>
      %21 = arith.mulf %20, %20 : vector<32x128xf32>
      %22 = arith.mulf %6, %6 : vector<32x128xf32>
      %23 = arith.mulf %21, %22 : vector<32x128xf32>
      %cst_10 = arith.constant 4.8828125E-4 : f32
      %24 = vector.broadcast %cst_10 : f32 to vector<32x128xf32>
      %25 = arith.mulf %23, %24 : vector<32x128xf32>
      %26 = arith.select %16, %17, %25 : vector<32x128xi1>, vector<32x128xf32>
      %27 = arith.select %16, %6, %14 : vector<32x128xi1>, vector<32x128xf32>
      %28 = math.log %27 : vector<32x128xf32>
      %29 = arith.mulf %26, %28 : vector<32x128xf32>
      %c0_11 = arith.constant 0 : index
      %c0_12 = arith.constant 0 : index
      %30 = vector.load %arg4[%c0_11, %c0_12] : memref<8x128xf32, #tpu.memory_space<vmem>>, vector<8x128xf32>
      %31 = vector.shape_cast %29 : vector<32x128xf32> to vector<4x8x128xf32>
      %cst_13 = arith.constant dense<0.000000e+00> : vector<8x128xf32>
      %32 = vector.multi_reduction <add>, %31, %cst_13 [0] : vector<4x8x128xf32> to vector<8x128xf32>
      %33 = arith.addf %30, %32 : vector<8x128xf32>
      %c0_14 = arith.constant 0 : index
      %c0_15 = arith.constant 0 : index
      %34 = vector.load %arg4[%c0_14, %c0_15] : memref<8x128xf32, #tpu.memory_space<vmem>>, vector<8x128xf32>
      tpu.vector_store %arg4[%c0_14, %c0_15], %33 {strides = array<i32>} : memref<8x128xf32, #tpu.memory_space<vmem>>, vector<8x128xf32>,
    } else {
    }
    %c0_i32_6 = arith.constant 0 : i32
    %10 = arith.cmpi eq, %1, %c0_i32_6 : i32
    %11 = arith.extui %10 : i1 to i32
    %c0_i32_7 = arith.constant 0 : i32
    %12 = arith.cmpi ne, %11, %c0_i32_7 : i32
    scf.if %12 {
      %13 = tpu.iota {dimensions = array<i32: 0>} : vector<32x128xi32>
      %c32_i32 = arith.constant 32 : i32
      %14 = arith.muli %1, %c32_i32 : i32
      %15 = vector.broadcast %14 : i32 to vector<32x128xi32>
      %16 = arith.addi %13, %15 : vector<32x128xi32>
      %c16_i32 = arith.constant 16 : i32
      %17 = vector.broadcast %c16_i32 : i32 to vector<32x128xi32>
      %18 = arith.cmpi slt, %16, %17 : vector<32x128xi32>
      %cst = arith.constant 1.000000e+00 : f32
      %19 = vector.broadcast %cst : f32 to vector<32x128xf32>
      %20 = arith.subf %19, %6 : vector<32x128xf32>
      %cst_8 = arith.constant 1.000000e+00 : f32
      %21 = vector.broadcast %cst_8 : f32 to vector<32x128xf32>
      %22 = arith.cmpf oeq, %5, %21 : vector<32x128xf32>
      %23 = arith.mulf %20, %20 : vector<32x128xf32>
      %cst_9 = arith.constant 1.000000e+00 : f32
      %24 = vector.broadcast %cst_9 : f32 to vector<32x128xf32>
      %25 = arith.subf %24, %5 : vector<32x128xf32>
      %26 = arith.mulf %25, %25 : vector<32x128xf32>
      %27 = arith.mulf %26, %26 : vector<32x128xf32>
      %28 = arith.mulf %6, %6 : vector<32x128xf32>
      %29 = arith.mulf %27, %28 : vector<32x128xf32>
      %cst_10 = arith.constant 4.8828125E-4 : f32
      %30 = vector.broadcast %cst_10 : f32 to vector<32x128xf32>
      %31 = arith.mulf %29, %30 : vector<32x128xf32>
      %32 = arith.select %22, %23, %31 : vector<32x128xi1>, vector<32x128xf32>
      %33 = arith.select %22, %6, %20 : vector<32x128xi1>, vector<32x128xf32>
      %cst_11 = arith.constant 0.000000e+00 : f32
      %34 = vector.broadcast %cst_11 : f32 to vector<32x128xf32>
      %35 = arith.select %18, %32, %34 : vector<32x128xi1>, vector<32x128xf32>
      %cst_12 = arith.constant 1.000000e+00 : f32
      %36 = vector.broadcast %cst_12 : f32 to vector<32x128xf32>
      %37 = arith.select %18, %33, %36 : vector<32x128xi1>, vector<32x128xf32>
      %38 = math.log %37 : vector<32x128xf32>
      %39 = arith.mulf %35, %38 : vector<32x128xf32>
      %c0_13 = arith.constant 0 : index
      %c0_14 = arith.constant 0 : index
      %40 = vector.load %arg4[%c0_13, %c0_14] : memref<8x128xf32, #tpu.memory_space<vmem>>, vector<8x128xf32>
      %41 = vector.shape_cast %39 : vector<32x128xf32> to vector<4x8x128xf32>
      %cst_15 = arith.constant dense<0.000000e+00> : vector<8x128xf32>
      %42 = vector.multi_reduction <add>, %41, %cst_15 [0] : vector<4x8x128xf32> to vector<8x128xf32>
      %43 = arith.addf %40, %42 : vector<8x128xf32>
      %c0_16 = arith.constant 0 : index
      %c0_17 = arith.constant 0 : index
      %44 = vector.load %arg4[%c0_16, %c0_17] : memref<8x128xf32, #tpu.memory_space<vmem>>, vector<8x128xf32>
      tpu.vector_store %arg4[%c0_16, %c0_17], %43 {strides = array<i32>} : memref<8x128xf32, #tpu.memory_space<vmem>>, vector<8x128xf32>,
    } else {
    }
    return
  }
  func.func @transform_0(%arg0: i32, %arg1: i32) -> (i32, i32) {
    %c1_i32 = arith.constant 1 : i32
    %0 = arith.muli %arg0, %c1_i32 : i32
    %1 = arith.addi %0, %arg1 : i32
    %c0_i32 = arith.constant 0 : i32
    %c0_i32_0 = arith.constant 0 : i32
    return %1, %c0_i32 : i32, i32
  }
  func.func @transform_1(%arg0: i32, %arg1: i32) -> (i32, i32) {
    %c1_i32 = arith.constant 1 : i32
    %0 = arith.muli %arg0, %c1_i32 : i32
    %1 = arith.addi %0, %arg1 : i32
    %c0_i32 = arith.constant 0 : i32
    %c0_i32_0 = arith.constant 0 : i32
    return %1, %c0_i32 : i32, i32
  }
  func.func @transform_2(%arg0: i32, %arg1: i32) -> (i32, i32) {
    %c0_i32 = arith.constant 0 : i32
    %c0_i32_0 = arith.constant 0 : i32
    return %arg0, %c0_i32 : i32, i32
  }
}

</mosaic_0001>

<llo_original>
// kernel: tpu_custom_call.1
$region0: #{tpu_custom_call.1}
  #allocation0 [shape = 'u32[]', space=smem, size = 0x4, offset = 0x4, fixed_abs, tag = 'smem constant byte address 0x4 - core index']
  #allocation1 [shape = 'u32[144,128]{1,0:T(1,128)}', space=vmem, size = 0x12000, scoped, tag = 'internal scratch']
  %s0 = inlined_call_operand.hbm [shape: f32[16,128], index: 0, kind: input, shape index: {}]
  %s1 = inlined_call_operand.hbm [shape: f32[16,128], index: 1, kind: input, shape index: {}]
  %s2 = inlined_call_operand.hbm [shape: f32[8,128], index: 2, kind: output, shape index: {}]
  %s3 = sld [smem:[#allocation0]]
  $region38: #{tpu_custom_call.1} parent=0
    _
  %s5 = ssub.s32 1, %s3
  %s6 = scalar_select 0, %s5, %s3
  $region1: #{tpu_custom_call.1} parent=0
    #allocation2 [shape = 'u8[16384]{0}', space=vmem, size = 0x4000, scoped, tag = 'input window, operand 0, single buffered']
    #allocation3 [shape = 's32[1]{0}', space=sflag, size = 0x4, scoped, tag = 'scoped memory for tpu_custom_call.1']
    #allocation4 [shape = 's32[1]{0}', space=sflag, size = 0x4, scoped, tag = 'scoped memory for tpu_custom_call.1']
    #allocation5 [shape = 'u8[16384]{0}', space=vmem, size = 0x4000, scoped, tag = 'input window, operand 1, single buffered']
    #allocation6 [shape = 's32[1]{0}', space=sflag, size = 0x4, scoped, tag = 'scoped memory for tpu_custom_call.1']
    #allocation7 [shape = 'u8[4096]{0}', space=vmem, size = 0x1000, scoped, tag = 'output window, operand 0, single buffered']
    %7 = vsyncpa [#allocation3], 0
    %8 = vsyncpa [#allocation6], 0
    %9 = vsyncpa [#allocation4], 0
    // Predicated region
    $region2: #{tpu_custom_call.1} parent=1 // pred_check
      _
    $region3: #{tpu_custom_call.1} parent=1 // pred_check_branch
      %11 = sbr.rel (0) target = $region5
    $region4: #{tpu_custom_call.1} parent=1 // pred_region
      %s12 = sadd.s32 0, 0
      %s13 = smul.u32 4, %s12
      %s14 = ssub.s32 2, %s13
      %s15 = smul.u32 128, %s14
      %s17 = ssub.s32 512, %s15
      %18 = vsyncadd [#allocation3], %s17
      %p19 = scmp.ne.s32.totalorder 0, %s15
      %s20 = smul.addr %s13, 128
      %s21 = scalar_lea.hbm %s0, %s20
      %s22 = smul.u32 8, %s14
      %s23 = sshll.u32 [#allocation2], 4
      %s24 = int_to_ptr.vmem [resolvable:$true] %s23
      %s25 = sshll.u32 %s22, 4
      %29 = dma.hbm_to_vmem [thread:$0]  (%p19), %s21, %s25, %s24, [#allocation3], 128, 128, 8
    $region5: #{tpu_custom_call.1} parent=1 // pred_fallthru
      _
    // Predicated region
    $region6: #{tpu_custom_call.1} parent=1 // pred_check
      _
    $region7: #{tpu_custom_call.1} parent=1 // pred_check_branch
      %31 = sbr.rel (0) target = $region9
    $region8: #{tpu_custom_call.1} parent=1 // pred_region
      %s32 = sadd.s32 0, 0
      %s33 = smul.u32 4, %s32
      %s34 = ssub.s32 2, %s33
      %s35 = smul.u32 128, %s34
      %s37 = ssub.s32 512, %s35
      %38 = vsyncadd [#allocation6], %s37
      %p39 = scmp.ne.s32.totalorder 0, %s35
      %s40 = smul.addr %s33, 128
      %s41 = scalar_lea.hbm %s1, %s40
      %s42 = smul.u32 8, %s34
      %s43 = sshll.u32 [#allocation5], 4
      %s44 = int_to_ptr.vmem [resolvable:$true] %s43
      %s45 = sshll.u32 %s42, 4
      %49 = dma.hbm_to_vmem [thread:$0]  (%p39), %s41, %s45, %s44, [#allocation6], 128, 128, 8
    $region9: #{tpu_custom_call.1} parent=1 // pred_fallthru
      _
    // Predicated region
    $region10: #{tpu_custom_call.1} parent=1 // pred_check
      _
    $region11: #{tpu_custom_call.1} parent=1 // pred_check_branch
      %51 = sbr.rel (0) target = $region13
    $region12: #{tpu_custom_call.1} parent=1 // pred_region
      %52 = dma.done [#allocation3], 512
    $region13: #{tpu_custom_call.1} parent=1 // pred_fallthru
      _
    // Predicated region
    $region14: #{tpu_custom_call.1} parent=1 // pred_check
      _
    $region15: #{tpu_custom_call.1} parent=1 // pred_check_branch
      %54 = sbr.rel (0) target = $region17
    $region16: #{tpu_custom_call.1} parent=1 // pred_region
      %55 = dma.done [#allocation6], 512
    $region17: #{tpu_custom_call.1} parent=1 // pred_fallthru
      _
    %s56 = sadd.s32 0, 0
    %s57 = smul.u32 4, %s56
    %s58 = ssub.s32 2, %s57
    %s59 = smul.u32 128, %s58
    %s60 = sadd.s32 0, 0
    %s61 = smul.u32 4, %s60
    %s62 = ssub.s32 2, %s61
    %s63 = smul.u32 128, %s62
    %s64 = sadd.s32 0, 0
    %p65 = scmp.eq.s32.totalorder 0, 0
    // Predicated region
    $region18: #{tpu_custom_call.1} parent=1 // pred_check
      %p66 = pneg %p65
    $region19: #{tpu_custom_call.1} parent=1 // pred_check_branch
      %68 = sbr.rel (%p66) target = $region21
    $region20: #{tpu_custom_call.1} parent=1 // pred_region
      %69 = vst [vmem:[#allocation7] sm:$0xff] 0.0
    $region21: #{tpu_custom_call.1} parent=1 // pred_fallthru
      _
    %v70 = vld [vmem:[#allocation2] sm:$0xff]
    %v71 = vld [vmem:[#allocation2 + $0x8] sm:$0xff]
    %v72 = vld [vmem:[#allocation2 + $0x10] sm:$0xff]
    %v73 = vld [vmem:[#allocation2 + $0x18] sm:$0xff]
    %v74 = vld [vmem:[#allocation5] sm:$0xff]
    %v75 = vld [vmem:[#allocation5 + $0x8] sm:$0xff]
    %v76 = vld [vmem:[#allocation5 + $0x10] sm:$0xff]
    %v77 = vld [vmem:[#allocation5 + $0x18] sm:$0xff]
    %p78 = scmp.lt.s32.totalorder %s64, 0
    // Predicated region
    $region22: #{tpu_custom_call.1} parent=1 // pred_check
      %p79 = pneg %p78
    $region23: #{tpu_custom_call.1} parent=1 // pred_check_branch
      %81 = sbr.rel (%p79) target = $region25
    $region24: #{tpu_custom_call.1} parent=1 // pred_region
      %v82 = vsub.f32 1.0, %v74
      %v83 = vsub.f32 1.0, %v75
      %v84 = vsub.f32 1.0, %v76
      %v85 = vsub.f32 1.0, %v77
      %vm86 = vcmp.eq.f32.partialorder %v70, 1.0
      %vm87 = vcmp.eq.f32.partialorder %v71, 1.0
      %vm88 = vcmp.eq.f32.partialorder %v72, 1.0
      %vm89 = vcmp.eq.f32.partialorder %v73, 1.0
      %v90 = vmul.f32 %v82, %v82
      %v91 = vmul.f32 %v83, %v83
      %v92 = vmul.f32 %v84, %v84
      %v93 = vmul.f32 %v85, %v85
      %v94 = vsub.f32 1.0, %v70
      %v95 = vsub.f32 1.0, %v71
      %v96 = vsub.f32 1.0, %v72
      %v97 = vsub.f32 1.0, %v73
      %v98 = vmul.f32 %v94, %v94
      %v99 = vmul.f32 %v95, %v95
      %v100 = vmul.f32 %v96, %v96
      %v101 = vmul.f32 %v97, %v97
      %v102 = vmul.f32 %v98, %v98
      %v103 = vmul.f32 %v99, %v99
      %v104 = vmul.f32 %v100, %v100
      %v105 = vmul.f32 %v101, %v101
      %v106 = vmul.f32 %v74, %v74
      %v107 = vmul.f32 %v75, %v75
      %v108 = vmul.f32 %v76, %v76
      %v109 = vmul.f32 %v77, %v77
      %v110 = vmul.f32 %v102, %v106
      %v111 = vmul.f32 %v103, %v107
      %v112 = vmul.f32 %v104, %v108
      %v113 = vmul.f32 %v105, %v109
      %v114 = vmul.f32 %v110, 0.00048828125
      %v115 = vmul.f32 %v111, 0.00048828125
      %v116 = vmul.f32 %v112, 0.00048828125
      %v117 = vmul.f32 %v113, 0.00048828125
      %v118 = vsel %vm86, %v90, %v114
      %v119 = vsel %vm87, %v91, %v115
      %v120 = vsel %vm88, %v92, %v116
      %v121 = vsel %vm89, %v93, %v117
      %v122 = vsel %vm86, %v74, %v82
      %v123 = vsel %vm87, %v75, %v83
      %v124 = vsel %vm88, %v76, %v84
      %v125 = vsel %vm89, %v77, %v85
      %v126 = vlog2.pop %v122
      %v127 = vmul.f32 %v126, 0.6931472
      %v128 = vlog2.pop %v123
      %v129 = vmul.f32 %v128, 0.6931472
      %v130 = vlog2.pop %v124
      %v131 = vmul.f32 %v130, 0.6931472
      %v132 = vlog2.pop %v125
      %v133 = vmul.f32 %v132, 0.6931472
      %v134 = vmul.f32 %v118, %v127
      %v135 = vmul.f32 %v119, %v129
      %v136 = vmul.f32 %v120, %v131
      %v137 = vmul.f32 %v121, %v133
      %v138 = vld [vmem:[#allocation7] sm:$0xff]
      %v139 = vadd.f32 %v134, %v135
      %v140 = vadd.f32 %v139, %v136
      %v141 = vadd.f32 %v140, %v137
      %v142 = vadd.f32 %v138, %v141
      %143 = vst [vmem:[#allocation7] sm:$0xff] %v142
    $region25: #{tpu_custom_call.1} parent=1 // pred_fallthru
      _
    %p144 = scmp.eq.s32.totalorder %s64, 0
    // Predicated region
    $region26: #{tpu_custom_call.1} parent=1 // pred_check
      %p145 = pneg %p144
    $region27: #{tpu_custom_call.1} parent=1 // pred_check_branch
      %147 = sbr.rel (%p145) target = $region29
    $region28: #{tpu_custom_call.1} parent=1 // pred_region
      %v148 = vlaneseq
      %v149 = vshrl.u32 %v148, 7
      %v150 = vadd.s32 %v149, 8
      %v151 = vadd.s32 %v149, 16
      %v152 = vadd.s32 %v149, 24
      %s153 = smul.u32 %s64, 32
      %v154 = vstv %s153
      %v155 = vadd.s32 %v149, %v154
      %v156 = vadd.s32 %v150, %v154
      %v157 = vadd.s32 %v151, %v154
      %v158 = vadd.s32 %v152, %v154
      %vm159 = vcmp.lt.s32.totalorder %v155, 16
      %vm160 = vcmp.lt.s32.totalorder %v156, 16
      %vm161 = vcmp.lt.s32.totalorder %v157, 16
      %vm162 = vcmp.lt.s32.totalorder %v158, 16
      %v163 = vsub.f32 1.0, %v74
      %v164 = vsub.f32 1.0, %v75
      %v165 = vsub.f32 1.0, %v76
      %v166 = vsub.f32 1.0, %v77
      %vm167 = vcmp.eq.f32.partialorder %v70, 1.0
      %vm168 = vcmp.eq.f32.partialorder %v71, 1.0
      %vm169 = vcmp.eq.f32.partialorder %v72, 1.0
      %vm170 = vcmp.eq.f32.partialorder %v73, 1.0
      %v171 = vmul.f32 %v163, %v163
      %v172 = vmul.f32 %v164, %v164
      %v173 = vmul.f32 %v165, %v165
      %v174 = vmul.f32 %v166, %v166
      %v175 = vsub.f32 1.0, %v70
      %v176 = vsub.f32 1.0, %v71
      %v177 = vsub.f32 1.0, %v72
      %v178 = vsub.f32 1.0, %v73
      %v179 = vmul.f32 %v175, %v175
      %v180 = vmul.f32 %v176, %v176
      %v181 = vmul.f32 %v177, %v177
      %v182 = vmul.f32 %v178, %v178
      %v183 = vmul.f32 %v179, %v179
      %v184 = vmul.f32 %v180, %v180
      %v185 = vmul.f32 %v181, %v181
      %v186 = vmul.f32 %v182, %v182
      %v187 = vmul.f32 %v74, %v74
      %v188 = vmul.f32 %v75, %v75
      %v189 = vmul.f32 %v76, %v76
      %v190 = vmul.f32 %v77, %v77
      %v191 = vmul.f32 %v183, %v187
      %v192 = vmul.f32 %v184, %v188
      %v193 = vmul.f32 %v185, %v189
      %v194 = vmul.f32 %v186, %v190
      %v195 = vmul.f32 %v191, 0.00048828125
      %v196 = vmul.f32 %v192, 0.00048828125
      %v197 = vmul.f32 %v193, 0.00048828125
      %v198 = vmul.f32 %v194, 0.00048828125
      %v199 = vsel %vm167, %v171, %v195
      %v200 = vsel %vm168, %v172, %v196
      %v201 = vsel %vm169, %v173, %v197
      %v202 = vsel %vm170, %v174, %v198
      %v203 = vsel %vm167, %v74, %v163
      %v204 = vsel %vm168, %v75, %v164
      %v205 = vsel %vm169, %v76, %v165
      %v206 = vsel %vm170, %v77, %v166
      %v207 = vsel %vm159, %v199, 0.0
      %v208 = vsel %vm160, %v200, 0.0
      %v209 = vsel %vm161, %v201, 0.0
      %v210 = vsel %vm162, %v202, 0.0
      %v211 = vsel %vm159, %v203, 1.0
      %v212 = vsel %vm160, %v204, 1.0
      %v213 = vsel %vm161, %v205, 1.0
      %v214 = vsel %vm162, %v206, 1.0
      %v215 = vlog2.pop %v211
      %v216 = vmul.f32 %v215, 0.6931472
      %v217 = vlog2.pop %v212
      %v218 = vmul.f32 %v217, 0.6931472
      %v219 = vlog2.pop %v213
      %v220 = vmul.f32 %v219, 0.6931472
      %v221 = vlog2.pop %v214
      %v222 = vmul.f32 %v221, 0.6931472
      %v223 = vmul.f32 %v207, %v216
      %v224 = vmul.f32 %v208, %v218
      %v225 = vmul.f32 %v209, %v220
      %v226 = vmul.f32 %v210, %v222
      %v227 = vld [vmem:[#allocation7] sm:$0xff]
      %v228 = vadd.f32 %v223, %v224
      %v229 = vadd.f32 %v228, %v225
      %v230 = vadd.f32 %v229, %v226
      %v231 = vadd.f32 %v227, %v230
      %232 = vst [vmem:[#allocation7] sm:$0xff] %v231
    $region29: #{tpu_custom_call.1} parent=1 // pred_fallthru
      _
    // Predicated region
    $region30: #{tpu_custom_call.1} parent=1 // pred_check
      _
    $region31: #{tpu_custom_call.1} parent=1 // pred_check_branch
      %234 = sbr.rel (0) target = $region33
    $region32: #{tpu_custom_call.1} parent=1 // pred_region
      %s236 = ssub.s32 128, 128
      %237 = vsyncadd [#allocation4], %s236
      %s239 = sshll.u32 [#allocation7], 4
      %s240 = int_to_ptr.vmem [resolvable:$true] %s239
      %242 = dma.vmem_to_hbm [thread:$0]  %s240, 128, %s2, [#allocation4]
    $region33: #{tpu_custom_call.1} parent=1 // pred_fallthru
      _
    // Predicated region
    $region34: #{tpu_custom_call.1} parent=1 // pred_check
      _
    $region35: #{tpu_custom_call.1} parent=1 // pred_check_branch
      %244 = sbr.rel (0) target = $region37
    $region36: #{tpu_custom_call.1} parent=1 // pred_region
      %245 = dma.done [#allocation4], 128
    $region37: #{tpu_custom_call.1} parent=1 // pred_fallthru
      _
    %246 = vsyncpa [#allocation3], 1
    %247 = vsyncpa [#allocation6], 1
    %248 = vsyncpa [#allocation4], 1

</llo_original>
